<compile_context>
chip_gen: v7x
topology: tpu7x:2x2x1
jax: 0.10.0
libtpu: 0.0.40
codegen_flags: <defaults>
</compile_context>

<pallas_src>
import functools

import jax
import jax.numpy as jnp
from jax.experimental import pallas as pl
from jax.experimental.pallas import tpu as pltpu

LANE = 128  # lane-dense padded feature width


def _gin_net_kernel(x_ref, a_ref, w_ref, p_ref, o_ref, *, out_channels):
    # One grid step == one graph.
    a = a_ref[0]          # [N, N]   bf16, (A + I) with A[dst, src] = edge count
    h = x_ref[0]          # [N, 128] bf16, zero-padded node features
    p = p_ref[...]        # [8, 128] f32, packed biases / BN params

    b10, g0, be0, b20 = p[0:1, :], p[1:2, :], p[2:3, :], p[3:4, :]
    b11, g1, be1, b21 = p[4:5, :], p[5:6, :], p[6:7, :], p[7:8, :]

    def gin_conv(h_b, w1, b1, gamma, beta, w2, b2):
        # GIN sum aggregation; the (1 + eps) * x self-term (eps=0) is folded
        # into A on the host, so no extra [N, F] add here.
        agg = jnp.dot(a, h_b, preferred_element_type=jnp.float32)
        # MLP layer 0: Linear -> BatchNorm1d (fused batch stats) -> ReLU
        z = jnp.dot(agg, w1, preferred_element_type=jnp.float32) + b1
        mu = jnp.mean(z, axis=0, keepdims=True)
        var = jnp.mean(z * z, axis=0, keepdims=True) - mu * mu  # biased var
        scale = gamma * jax.lax.rsqrt(var + 1e-5)
        shift = beta - mu * scale
        z = jnp.maximum(z * scale + shift, 0.0)
        # MLP layer 1 (last layer of the MLP): plain Linear
        return jnp.dot(z, w2, preferred_element_type=jnp.float32) + b2

    # conv 0
    h1 = gin_conv(h, w_ref[0], b10, g0, be0, w_ref[1], b20)
    # inter-layer: relu(dropout(x, p=0.0)) == relu(x); bf16 for the next
    # bf16 x bf16 aggregation matmul.
    h1 = jnp.maximum(h1, 0.0).astype(jnp.bfloat16)
    # conv 1 (last)
    h2 = gin_conv(h1, w_ref[2], b11, g1, be1, w_ref[3], b21)

    # jk_mode == 'last': identity, then log_softmax over dim=1, masked to the
    # real (un-padded) output channels.
    col = jax.lax.broadcasted_iota(jnp.int32, h2.shape, 1)
    valid = col < out_channels
    hm = jnp.where(valid, h2, -1e30)
    m = jnp.max(hm, axis=1, keepdims=True)
    e = jnp.where(valid, jnp.exp(hm - m), 0.0)
    lse = m + jnp.log(jnp.sum(e, axis=1, keepdims=True))
    o_ref[0] = h2 - lse   # padded columns hold junk; sliced off on the host


def gin_net_forward(x, adj, params):
    """x: [B, N, in_ch] f32, adj: [B, N, N] edge counts, params: dict."""
    B, N, in_ch = x.shape
    out_ch = params["w21"].shape[1]
    F = LANE

    # --- host-side layout plumbing (lane-dense padding, dtype, packing) ----
    x_p = jnp.zeros((B, N, F), jnp.bfloat16).at[:, :, :in_ch].set(
        x.astype(jnp.bfloat16))
    # Fold the GIN self-term (eps=0) into the adjacency; counts stay tiny, so
    # bf16 is exact and halves the O(N^2) HBM traffic.
    a_p = (adj + jnp.eye(N, dtype=adj.dtype)[None]).astype(jnp.bfloat16)

    def pad_w(w):
        fi, fo = w.shape
        return jnp.zeros((F, F), jnp.float32).at[:fi, :fo].set(w)

    def pad_v(v):
        v = v.reshape(-1)
        return jnp.zeros((F,), jnp.float32).at[:v.shape[0]].set(v)

    w_slab = jnp.stack([pad_w(params["w10"]), pad_w(params["w20"]),
                        pad_w(params["w11"]), pad_w(params["w21"])])
    p_slab = jnp.stack([pad_v(params[k]) for k in
                        ("b10", "g0", "be0", "b20", "b11", "g1", "be1", "b21")])

    kernel = functools.partial(_gin_net_kernel, out_channels=out_ch)
    out_pad = pl.pallas_call(
        kernel,
        out_shape=jax.ShapeDtypeStruct((B, N, F), jnp.float32),
        grid_spec=pltpu.PrefetchScalarGridSpec(
            num_scalar_prefetch=0,
            grid=(B,),
            in_specs=[
                pl.BlockSpec((1, N, F), lambda b: (b, 0, 0)),   # x (per graph)
                pl.BlockSpec((1, N, N), lambda b: (b, 0, 0)),   # A+I (per graph)
                pl.BlockSpec((4, F, F), lambda b: (0, 0, 0)),   # weights, resident
                pl.BlockSpec((8, F), lambda b: (0, 0)),         # biases/BN, resident
            ],
            out_specs=pl.BlockSpec((1, N, F), lambda b: (b, 0, 0)),
        ),
        compiler_params=pltpu.CompilerParams(
            dimension_semantics=("parallel",),
            vmem_limit_bytes=32 << 20,
        ),
    )(x_p, a_p, w_slab, p_slab)
    return out_pad[:, :, :out_ch]


def make_params(key, in_channels, hidden, out_channels):
    """Deterministic synthetic parameters matching the module's shapes.

    Linear weights are stored as [fan_in, fan_out] (PyTorch weight.T);
    biases and BatchNorm gamma/beta are 1-D [fan_out].
    """
    ks = jax.random.split(key, 8)

    def lin(k, fi, fo):
        scale = 1.0 / jnp.sqrt(jnp.float32(fi))
        kw, kb = jax.random.split(k)
        w = jax.random.uniform(kw, (fi, fo), jnp.float32, -scale, scale)
        b = jax.random.uniform(kb, (fo,), jnp.float32, -scale, scale)
        return w, b

    w10, b10 = lin(ks[0], in_channels, hidden)
    w20, b20 = lin(ks[1], hidden, hidden)
    w11, b11 = lin(ks[2], hidden, hidden)
    w21, b21 = lin(ks[3], hidden, out_channels)
    g0 = 1.0 + 0.1 * jax.random.normal(ks[4], (hidden,), jnp.float32)
    be0 = 0.1 * jax.random.normal(ks[5], (hidden,), jnp.float32)
    g1 = 1.0 + 0.1 * jax.random.normal(ks[6], (hidden,), jnp.float32)
    be1 = 0.1 * jax.random.normal(ks[7], (hidden,), jnp.float32)
    return dict(w10=w10, b10=b10, g0=g0, be0=be0, w20=w20, b20=b20,
                w11=w11, b11=b11, g1=g1, be1=be1, w21=w21, b21=b21)


def make_graphs(key, batch, n_nodes, in_channels):
    """Batch of small graphs: shared bidirectional ring + per-graph chords."""
    kx, ke = jax.random.split(key)
    x = jax.random.normal(kx, (batch, n_nodes, in_channels), jnp.float32)

    i = jnp.arange(n_nodes)
    src = jnp.concatenate([i, (i + 1) % n_nodes])
    dst = jnp.concatenate([(i + 1) % n_nodes, i])
    # Dense adjacency: A[dst, src] += 1 => (A @ x)[v] = sum_{u -> v} x[u]
    ring = jnp.zeros((n_nodes, n_nodes), jnp.float32).at[dst, src].add(1.0)

    n_extra = n_nodes // 2
    def chords(k):
        es = jax.random.randint(k, (2, n_extra), 0, n_nodes)
        return jnp.zeros((n_nodes, n_nodes), jnp.float32).at[es[1], es[0]].add(1.0)

    extra = jax.vmap(chords)(jax.random.split(ke, batch))
    adj = ring[None] + extra
    return x, adj


if __name__ == "__main__":
    B = 8            # batch of independent graphs (grid axis, "parallel")
    N_NODES = 32
    IN_CHANNELS = 16
    HIDDEN = 32
    OUT_CHANNELS = 8

    root = jax.random.PRNGKey(0)
    k_graph, k_params = jax.random.split(root)

    x, adj = make_graphs(k_graph, B, N_NODES, IN_CHANNELS)
    params = make_params(k_params, IN_CHANNELS, HIDDEN, OUT_CHANNELS)

    out = gin_net_forward(x, adj, params)
    out = jax.block_until_ready(out)

    assert out.shape == (B, N_NODES, OUT_CHANNELS)
    assert bool(jnp.all(jnp.isfinite(out)))
    # each row of log_softmax must log-sum-exp to ~0
    row_lse = jax.scipy.special.logsumexp(out, axis=-1)
    assert bool(jnp.all(jnp.abs(row_lse) < 1e-3))

    print("KERNEL_OK")
</pallas_src>

<mosaic_0001>
module attributes {stable_mosaic.version = 11 : i64} {
  func.func @_gin_net_kernel(%arg0: i32, %arg1: memref<1x32x128xbf16, #tpu.memory_space<vmem>>, %arg2: memref<1x32x32xbf16, #tpu.memory_space<vmem>>, %arg3: memref<4x128x128xf32, #tpu.memory_space<vmem>>, %arg4: memref<8x128xf32, #tpu.memory_space<vmem>>, %arg5: memref<1x32x128xf32, #tpu.memory_space<vmem>>) attributes {dimension_semantics = [#tpu.dimension_semantics<parallel>], iteration_bounds = array<i64: 8>, scalar_prefetch = 0 : i64, scratch_operands = 0 : i64, tpu.core_type = #tpu.core_type<tc>, window_params = [{transform_indices = @transform_0, window_bounds = array<i64: 1, 32, 128>}, {transform_indices = @transform_1, window_bounds = array<i64: 1, 32, 32>}, {pipeline_mode = #tpu.pipeline_mode<synchronous>, transform_indices = @transform_2, window_bounds = array<i64: 4, 128, 128>}, {pipeline_mode = #tpu.pipeline_mode<synchronous>, transform_indices = @transform_3, window_bounds = array<i64: 8, 128>}, {transform_indices = @transform_4, window_bounds = array<i64: 1, 32, 128>}]} {
    %c0 = arith.constant 0 : index
    %c0_0 = arith.constant 0 : index
    %c0_1 = arith.constant 0 : index
    %0 = vector.load %arg2[%c0, %c0_0, %c0_1] : memref<1x32x32xbf16, #tpu.memory_space<vmem>>, vector<1x32x32xbf16>
    %1 = vector.shape_cast %0 : vector<1x32x32xbf16> to vector<32x32xbf16>
    %c0_2 = arith.constant 0 : index
    %c0_3 = arith.constant 0 : index
    %c0_4 = arith.constant 0 : index
    %2 = vector.load %arg1[%c0_2, %c0_3, %c0_4] : memref<1x32x128xbf16, #tpu.memory_space<vmem>>, vector<1x32x128xbf16>
    %3 = vector.shape_cast %2 : vector<1x32x128xbf16> to vector<32x128xbf16>
    %c0_5 = arith.constant 0 : index
    %c0_6 = arith.constant 0 : index
    %4 = vector.load %arg4[%c0_5, %c0_6] : memref<8x128xf32, #tpu.memory_space<vmem>>, vector<8x128xf32>
    %5 = vector.extract_strided_slice %4 {offsets = [0, 0], sizes = [1, 128], strides = [1, 1]} : vector<8x128xf32> to vector<1x128xf32>
    %6 = vector.extract_strided_slice %4 {offsets = [1, 0], sizes = [1, 128], strides = [1, 1]} : vector<8x128xf32> to vector<1x128xf32>
    %7 = vector.extract_strided_slice %4 {offsets = [2, 0], sizes = [1, 128], strides = [1, 1]} : vector<8x128xf32> to vector<1x128xf32>
    %8 = vector.extract_strided_slice %4 {offsets = [3, 0], sizes = [1, 128], strides = [1, 1]} : vector<8x128xf32> to vector<1x128xf32>
    %9 = vector.extract_strided_slice %4 {offsets = [4, 0], sizes = [1, 128], strides = [1, 1]} : vector<8x128xf32> to vector<1x128xf32>
    %10 = vector.extract_strided_slice %4 {offsets = [5, 0], sizes = [1, 128], strides = [1, 1]} : vector<8x128xf32> to vector<1x128xf32>
    %11 = vector.extract_strided_slice %4 {offsets = [6, 0], sizes = [1, 128], strides = [1, 1]} : vector<8x128xf32> to vector<1x128xf32>
    %12 = vector.extract_strided_slice %4 {offsets = [7, 0], sizes = [1, 128], strides = [1, 1]} : vector<8x128xf32> to vector<1x128xf32>
    %c0_7 = arith.constant 0 : index
    %c0_8 = arith.constant 0 : index
    %c0_9 = arith.constant 0 : index
    %13 = vector.load %arg3[%c0_7, %c0_8, %c0_9] : memref<4x128x128xf32, #tpu.memory_space<vmem>>, vector<1x128x128xf32>
    %14 = vector.shape_cast %13 : vector<1x128x128xf32> to vector<128x128xf32>
    %c1 = arith.constant 1 : index
    %c0_10 = arith.constant 0 : index
    %c0_11 = arith.constant 0 : index
    %15 = vector.load %arg3[%c1, %c0_10, %c0_11] : memref<4x128x128xf32, #tpu.memory_space<vmem>>, vector<1x128x128xf32>
    %16 = vector.shape_cast %15 : vector<1x128x128xf32> to vector<128x128xf32>
    %cst = arith.constant dense<0.000000e+00> : vector<32x128xf32>
    %17 = tpu.matmul %1, %3, %cst {dimension_numbers = #tpu.dot_dimension_numbers<[1], [0], [0], [1], [0, 0, 1, 1], [], []>} : vector<32x32xbf16>, vector<32x128xbf16>, vector<32x128xf32> -> vector<32x128xf32>
    %cst_12 = arith.constant dense<0.000000e+00> : vector<32x128xf32>
    %18 = tpu.matmul %17, %14, %cst_12 {dimension_numbers = #tpu.dot_dimension_numbers<[1], [0], [0], [1], [0, 0, 1, 1], [], []>} : vector<32x128xf32>, vector<128x128xf32>, vector<32x128xf32> -> vector<32x128xf32>
    %19 = vector.broadcast %5 : vector<1x128xf32> to vector<32x128xf32>
    %20 = arith.addf %18, %19 : vector<32x128xf32>
    %cst_13 = arith.constant dense<0.000000e+00> : vector<128xf32>
    %21 = vector.multi_reduction <add>, %20, %cst_13 [0] : vector<32x128xf32> to vector<128xf32>
    %22 = vector.shape_cast %21 : vector<128xf32> to vector<1x128xf32>
    %cst_14 = arith.constant 3.200000e+01 : f32
    %23 = vector.broadcast %cst_14 : f32 to vector<1x128xf32>
    %24 = arith.divf %22, %23 : vector<1x128xf32>
    %25 = arith.mulf %20, %20 : vector<32x128xf32>
    %cst_15 = arith.constant dense<0.000000e+00> : vector<128xf32>
    %26 = vector.multi_reduction <add>, %25, %cst_15 [0] : vector<32x128xf32> to vector<128xf32>
    %27 = vector.shape_cast %26 : vector<128xf32> to vector<1x128xf32>
    %cst_16 = arith.constant 3.200000e+01 : f32
    %28 = vector.broadcast %cst_16 : f32 to vector<1x128xf32>
    %29 = arith.divf %27, %28 : vector<1x128xf32>
    %30 = arith.mulf %24, %24 : vector<1x128xf32>
    %31 = arith.subf %29, %30 : vector<1x128xf32>
    %cst_17 = arith.constant 9.99999974E-6 : f32
    %32 = vector.broadcast %cst_17 : f32 to vector<1x128xf32>
    %33 = arith.addf %31, %32 : vector<1x128xf32>
    %34 = math.rsqrt %33 : vector<1x128xf32>
    %35 = arith.mulf %6, %34 : vector<1x128xf32>
    %36 = arith.mulf %24, %35 : vector<1x128xf32>
    %37 = arith.subf %7, %36 : vector<1x128xf32>
    %38 = vector.broadcast %35 : vector<1x128xf32> to vector<32x128xf32>
    %39 = arith.mulf %20, %38 : vector<32x128xf32>
    %40 = vector.broadcast %37 : vector<1x128xf32> to vector<32x128xf32>
    %41 = arith.addf %39, %40 : vector<32x128xf32>
    %cst_18 = arith.constant 0.000000e+00 : f32
    %42 = vector.broadcast %cst_18 : f32 to vector<32x128xf32>
    %43 = arith.maximumf %41, %42 : vector<32x128xf32>
    %cst_19 = arith.constant dense<0.000000e+00> : vector<32x128xf32>
    %44 = tpu.matmul %43, %16, %cst_19 {dimension_numbers = #tpu.dot_dimension_numbers<[1], [0], [0], [1], [0, 0, 1, 1], [], []>} : vector<32x128xf32>, vector<128x128xf32>, vector<32x128xf32> -> vector<32x128xf32>
    %45 = vector.broadcast %8 : vector<1x128xf32> to vector<32x128xf32>
    %46 = arith.addf %44, %45 : vector<32x128xf32>
    %cst_20 = arith.constant 0.000000e+00 : f32
    %47 = vector.broadcast %cst_20 : f32 to vector<32x128xf32>
    %48 = arith.maximumf %46, %47 : vector<32x128xf32>
    %49 = arith.truncf %48 : vector<32x128xf32> to vector<32x128xbf16>
    %c2 = arith.constant 2 : index
    %c0_21 = arith.constant 0 : index
    %c0_22 = arith.constant 0 : index
    %50 = vector.load %arg3[%c2, %c0_21, %c0_22] : memref<4x128x128xf32, #tpu.memory_space<vmem>>, vector<1x128x128xf32>
    %51 = vector.shape_cast %50 : vector<1x128x128xf32> to vector<128x128xf32>
    %c3 = arith.constant 3 : index
    %c0_23 = arith.constant 0 : index
    %c0_24 = arith.constant 0 : index
    %52 = vector.load %arg3[%c3, %c0_23, %c0_24] : memref<4x128x128xf32, #tpu.memory_space<vmem>>, vector<1x128x128xf32>
    %53 = vector.shape_cast %52 : vector<1x128x128xf32> to vector<128x128xf32>
    %cst_25 = arith.constant dense<0.000000e+00> : vector<32x128xf32>
    %54 = tpu.matmul %1, %49, %cst_25 {dimension_numbers = #tpu.dot_dimension_numbers<[1], [0], [0], [1], [0, 0, 1, 1], [], []>} : vector<32x32xbf16>, vector<32x128xbf16>, vector<32x128xf32> -> vector<32x128xf32>
    %cst_26 = arith.constant dense<0.000000e+00> : vector<32x128xf32>
    %55 = tpu.matmul %54, %51, %cst_26 {dimension_numbers = #tpu.dot_dimension_numbers<[1], [0], [0], [1], [0, 0, 1, 1], [], []>} : vector<32x128xf32>, vector<128x128xf32>, vector<32x128xf32> -> vector<32x128xf32>
    %56 = vector.broadcast %9 : vector<1x128xf32> to vector<32x128xf32>
    %57 = arith.addf %55, %56 : vector<32x128xf32>
    %cst_27 = arith.constant dense<0.000000e+00> : vector<128xf32>
    %58 = vector.multi_reduction <add>, %57, %cst_27 [0] : vector<32x128xf32> to vector<128xf32>
    %59 = vector.shape_cast %58 : vector<128xf32> to vector<1x128xf32>
    %cst_28 = arith.constant 3.200000e+01 : f32
    %60 = vector.broadcast %cst_28 : f32 to vector<1x128xf32>
    %61 = arith.divf %59, %60 : vector<1x128xf32>
    %62 = arith.mulf %57, %57 : vector<32x128xf32>
    %cst_29 = arith.constant dense<0.000000e+00> : vector<128xf32>
    %63 = vector.multi_reduction <add>, %62, %cst_29 [0] : vector<32x128xf32> to vector<128xf32>
    %64 = vector.shape_cast %63 : vector<128xf32> to vector<1x128xf32>
    %cst_30 = arith.constant 3.200000e+01 : f32
    %65 = vector.broadcast %cst_30 : f32 to vector<1x128xf32>
    %66 = arith.divf %64, %65 : vector<1x128xf32>
    %67 = arith.mulf %61, %61 : vector<1x128xf32>
    %68 = arith.subf %66, %67 : vector<1x128xf32>
    %cst_31 = arith.constant 9.99999974E-6 : f32
    %69 = vector.broadcast %cst_31 : f32 to vector<1x128xf32>
    %70 = arith.addf %68, %69 : vector<1x128xf32>
    %71 = math.rsqrt %70 : vector<1x128xf32>
    %72 = arith.mulf %10, %71 : vector<1x128xf32>
    %73 = arith.mulf %61, %72 : vector<1x128xf32>
    %74 = arith.subf %11, %73 : vector<1x128xf32>
    %75 = vector.broadcast %72 : vector<1x128xf32> to vector<32x128xf32>
    %76 = arith.mulf %57, %75 : vector<32x128xf32>
    %77 = vector.broadcast %74 : vector<1x128xf32> to vector<32x128xf32>
    %78 = arith.addf %76, %77 : vector<32x128xf32>
    %cst_32 = arith.constant 0.000000e+00 : f32
    %79 = vector.broadcast %cst_32 : f32 to vector<32x128xf32>
    %80 = arith.maximumf %78, %79 : vector<32x128xf32>
    %cst_33 = arith.constant dense<0.000000e+00> : vector<32x128xf32>
    %81 = tpu.matmul %80, %53, %cst_33 {dimension_numbers = #tpu.dot_dimension_numbers<[1], [0], [0], [1], [0, 0, 1, 1], [], []>} : vector<32x128xf32>, vector<128x128xf32>, vector<32x128xf32> -> vector<32x128xf32>
    %82 = vector.broadcast %12 : vector<1x128xf32> to vector<32x128xf32>
    %83 = arith.addf %81, %82 : vector<32x128xf32>
    %84 = tpu.iota {dimensions = array<i32: 1>} : vector<32x128xi32>
    %c8_i32 = arith.constant 8 : i32
    %85 = vector.broadcast %c8_i32 : i32 to vector<32x128xi32>
    %86 = arith.cmpi slt, %84, %85 : vector<32x128xi32>
    %cst_34 = arith.constant -1.000000e+30 : f32
    %87 = vector.broadcast %cst_34 : f32 to vector<32x128xf32>
    %88 = arith.select %86, %83, %87 : vector<32x128xi1>, vector<32x128xf32>
    %cst_35 = arith.constant dense<0xFF800000> : vector<32xf32>
    %89 = vector.multi_reduction <maximumf>, %88, %cst_35 [1] : vector<32x128xf32> to vector<32xf32>
    %90 = vector.shape_cast %89 : vector<32xf32> to vector<32x1xf32>
    %91 = vector.broadcast %90 : vector<32x1xf32> to vector<32x128xf32>
    %92 = arith.subf %88, %91 : vector<32x128xf32>
    %93 = math.exp %92 : vector<32x128xf32>
    %cst_36 = arith.constant 0.000000e+00 : f32
    %94 = vector.broadcast %cst_36 : f32 to vector<32x128xf32>
    %95 = arith.select %86, %93, %94 : vector<32x128xi1>, vector<32x128xf32>
    %cst_37 = arith.constant dense<0.000000e+00> : vector<32xf32>
    %96 = vector.multi_reduction <add>, %95, %cst_37 [1] : vector<32x128xf32> to vector<32xf32>
    %97 = vector.shape_cast %96 : vector<32xf32> to vector<32x1xf32>
    %98 = math.log %97 : vector<32x1xf32>
    %99 = arith.addf %90, %98 : vector<32x1xf32>
    %100 = vector.broadcast %99 : vector<32x1xf32> to vector<32x128xf32>
    %101 = arith.subf %83, %100 : vector<32x128xf32>
    %c0_38 = arith.constant 0 : index
    %c0_39 = arith.constant 0 : index
    %c0_40 = arith.constant 0 : index
    %102 = vector.load %arg5[%c0_38, %c0_39, %c0_40] : memref<1x32x128xf32, #tpu.memory_space<vmem>>, vector<1x32x128xf32>
    %103 = vector.shape_cast %102 : vector<1x32x128xf32> to vector<32x128xf32>
    %104 = vector.shape_cast %101 : vector<32x128xf32> to vector<1x32x128xf32>
    tpu.vector_store %arg5[%c0_38, %c0_39, %c0_40], %104 {strides = array<i32>} : memref<1x32x128xf32, #tpu.memory_space<vmem>>, vector<1x32x128xf32>,
    return
  }
  func.func @transform_0(%arg0: i32) -> (i32, i32, i32) {
    %c0_i32 = arith.constant 0 : i32
    %c0_i32_0 = arith.constant 0 : i32
    %c0_i32_1 = arith.constant 0 : i32
    return %arg0, %c0_i32, %c0_i32_0 : i32, i32, i32
  }
  func.func @transform_1(%arg0: i32) -> (i32, i32, i32) {
    %c0_i32 = arith.constant 0 : i32
    %c0_i32_0 = arith.constant 0 : i32
    %c0_i32_1 = arith.constant 0 : i32
    return %arg0, %c0_i32, %c0_i32_0 : i32, i32, i32
  }
  func.func @transform_2(%arg0: i32) -> (i32, i32, i32) {
    %c0_i32 = arith.constant 0 : i32
    %c0_i32_0 = arith.constant 0 : i32
    %c0_i32_1 = arith.constant 0 : i32
    %c0_i32_2 = arith.constant 0 : i32
    return %c0_i32, %c0_i32_0, %c0_i32_1 : i32, i32, i32
  }
  func.func @transform_3(%arg0: i32) -> (i32, i32) {
    %c0_i32 = arith.constant 0 : i32
    %c0_i32_0 = arith.constant 0 : i32
    %c0_i32_1 = arith.constant 0 : i32
    return %c0_i32, %c0_i32_0 : i32, i32
  }
  func.func @transform_4(%arg0: i32) -> (i32, i32, i32) {
    %c0_i32 = arith.constant 0 : i32
    %c0_i32_0 = arith.constant 0 : i32
    %c0_i32_1 = arith.constant 0 : i32
    return %arg0, %c0_i32, %c0_i32_0 : i32, i32, i32
  }
}

</mosaic_0001>

<llo_original>
// kernel: tpu_custom_call.1
$region0: #{tpu_custom_call.1}
  #allocation0 [shape = 'u32[]', space=smem, size = 0x4, offset = 0x4, fixed_abs, tag = 'smem constant byte address 0x4 - core index']
  #allocation1 [shape = 'u32[144,128]{1,0:T(1,128)}', space=vmem, size = 0x12000, scoped, tag = 'internal scratch']
  %s0 = inlined_call_operand.hbm [shape: bf16[8,32,128], index: 0, kind: input, shape index: {}]
  %s1 = inlined_call_operand.hbm [shape: bf16[8,32,32], index: 1, kind: input, shape index: {}]
  %s2 = inlined_call_operand.hbm [shape: f32[4,128,128], index: 2, kind: input, shape index: {}]
  %s3 = inlined_call_operand.vmem [shape: f32[8,128], index: 3, kind: input, shape index: {}]
  %s4 = inlined_call_operand.hbm [shape: f32[8,32,128], index: 4, kind: output, shape index: {}]
  %s5 = sld [smem:[#allocation0]]
  $region61: #{tpu_custom_call.1} parent=0
    _
  %s7 = ssub.s32 1, %s5
  %s8 = scalar_select 0, %s7, %s5
  $region1: #{tpu_custom_call.1} parent=0
    #allocation2 [shape = 'u8[16384]{0}', space=vmem, size = 0x4000, scoped, tag = 'input window, operand 0']
    #allocation3 [shape = 's32[2]{0}', space=sflag, size = 0x8, scoped, tag = 'scoped memory for tpu_custom_call.1']
    #allocation4 [shape = 's32[2]{0}', space=sflag, size = 0x8, scoped, tag = 'scoped memory for tpu_custom_call.1']
    #allocation5 [shape = 'u8[16384]{0}', space=vmem, size = 0x4000, scoped, tag = 'input window, operand 1']
    #allocation6 [shape = 's32[2]{0}', space=sflag, size = 0x8, scoped, tag = 'scoped memory for tpu_custom_call.1']
    #allocation7 [shape = 'u8[262144]{0}', space=vmem, size = 0x40000, scoped, tag = 'input window, operand 2, single buffered']
    #allocation8 [shape = 'u8[32768]{0}', space=vmem, size = 0x8000, scoped, tag = 'output window, operand 0']
    %9 = vsyncpa [#allocation3], 0
    %s10 = scalar_lea.sflag [#allocation3], 1
    %11 = vsyncpa %s10, 0
    %12 = vsyncpa [#allocation6], 0
    %s13 = scalar_lea.sflag [#allocation6], 1
    %14 = vsyncpa %s13, 0
    %15 = vsyncpa [#allocation4], 0
    %s16 = scalar_lea.sflag [#allocation4], 1
    %17 = vsyncpa %s16, 0
    loop: start=0, step=1, limit=10
    $region2: #{tpu_custom_call.1} parent=1 // loop_pre_header
      _
    $region3: #{tpu_custom_call.1} parent=1 // loop_header
      %s19 = sphi 0, %s23
      %p20 = scmp.ge.s32.totalorder %s19, 10
      %s29 = sphi 0, %s31
      %s32 = sphi 0, %s29
      %s33 = sphi 0, %s32
      %s49 = sphi 0, %s33
      %s55 = sphi 0, %s57
      %s58 = sphi 0, %s55
      %s59 = sphi 0, %s58
      %s75 = sphi 0, %s59
      %s79 = sphi 0, %s79
      %s81 = sphi 0, %s79
      %s82 = sphi 0, %s81
      %s96 = sphi 0, %s82
      %s100 = sphi 0, %s100
      %s102 = sphi 0, %s100
      %s103 = sphi 0, %s102
      %s117 = sphi 0, %s103
      %s123 = sphi 0, %s125
      %s126 = sphi 0, %s123
      %s127 = sphi 0, %s126
      %s143 = sphi 0, %s127
    $region4: #{tpu_custom_call.1} parent=1 // loop_header_branch
      %22 = sbr.rel (%p20) target = $region8
    $region5: #{tpu_custom_call.1} parent=1 // loop_body
      %s24 = ssub.s32 %s19, 1
      %s25 = ssub.s32 %s19, 2
      %s26 = sadd.s32 %s19, 1
      %s27 = ssub.s32 %s19, %s26
      %p28 = scmp.eq.s32.totalorder %s27, 0
      %s30 = sadd.s32 %s29, 1
      %s31 = scalar_select %p28, %s29, %s30
      %p34 = pneg %p28
      %p35 = scmp.eq.s32.totalorder %s19, 7
      %p36 = por %p34, %p35
      %p37 = scmp.ne.s32.totalorder %s29, %s32
      %p38 = scmp.eq.s32.totalorder %s19, 0
      %p39 = por %p37, %p38
      %p40 = scmp.ne.s32.totalorder %s29, %s32
      %p41 = scmp.eq.s32.totalorder %s24, 7
      %p42 = por %p40, %p41
      %p43 = scmp.ne.s32.totalorder %s32, %s33
      %p44 = scmp.eq.s32.totalorder %s24, 0
      %p45 = por %p43, %p44
      %p46 = scmp.ne.s32.totalorder %s32, %s33
      %p47 = scmp.eq.s32.totalorder %s25, 7
      %p48 = por %p46, %p47
      %p50 = scmp.ne.s32.totalorder %s33, %s49
      %p51 = scmp.eq.s32.totalorder %s25, 0
      %p52 = por %p50, %p51
      %s53 = ssub.s32 %s19, %s26
      %p54 = scmp.eq.s32.totalorder %s53, 0
      %s56 = sadd.s32 %s55, 1
      %s57 = scalar_select %p54, %s55, %s56
      %p60 = pneg %p54
      %p61 = scmp.eq.s32.totalorder %s19, 7
      %p62 = por %p60, %p61
      %p63 = scmp.ne.s32.totalorder %s55, %s58
      %p64 = scmp.eq.s32.totalorder %s19, 0
      %p65 = por %p63, %p64
      %p66 = scmp.ne.s32.totalorder %s55, %s58
      %p67 = scmp.eq.s32.totalorder %s24, 7
      %p68 = por %p66, %p67
      %p69 = scmp.ne.s32.totalorder %s58, %s59
      %p70 = scmp.eq.s32.totalorder %s24, 0
      %p71 = por %p69, %p70
      %p72 = scmp.ne.s32.totalorder %s58, %s59
      %p73 = scmp.eq.s32.totalorder %s25, 7
      %p74 = por %p72, %p73
      %p76 = scmp.ne.s32.totalorder %s59, %s75
      %p77 = scmp.eq.s32.totalorder %s25, 0
      %p78 = por %p76, %p77
      %s80 = sadd.s32 %s79, 1
      %p83 = scmp.eq.s32.totalorder %s19, 7
      %p84 = scmp.ne.s32.totalorder %s79, %s81
      %p85 = scmp.eq.s32.totalorder %s19, 0
      %p86 = por %p84, %p85
      %p87 = scmp.ne.s32.totalorder %s79, %s81
      %p88 = scmp.eq.s32.totalorder %s24, 7
      %p89 = por %p87, %p88
      %p90 = scmp.ne.s32.totalorder %s81, %s82
      %p91 = scmp.eq.s32.totalorder %s24, 0
      %p92 = por %p90, %p91
      %p93 = scmp.ne.s32.totalorder %s81, %s82
      %p94 = scmp.eq.s32.totalorder %s25, 7
      %p95 = por %p93, %p94
      %p97 = scmp.ne.s32.totalorder %s82, %s96
      %p98 = scmp.eq.s32.totalorder %s25, 0
      %p99 = por %p97, %p98
      %s101 = sadd.s32 %s100, 1
      %p104 = scmp.eq.s32.totalorder %s19, 7
      %p105 = scmp.ne.s32.totalorder %s100, %s102
      %p106 = scmp.eq.s32.totalorder %s19, 0
      %p107 = por %p105, %p106
      %p108 = scmp.ne.s32.totalorder %s100, %s102
      %p109 = scmp.eq.s32.totalorder %s24, 7
      %p110 = por %p108, %p109
      %p111 = scmp.ne.s32.totalorder %s102, %s103
      %p112 = scmp.eq.s32.totalorder %s24, 0
      %p113 = por %p111, %p112
      %p114 = scmp.ne.s32.totalorder %s102, %s103
      %p115 = scmp.eq.s32.totalorder %s25, 7
      %p116 = por %p114, %p115
      %p118 = scmp.ne.s32.totalorder %s103, %s117
      %p119 = scmp.eq.s32.totalorder %s25, 0
      %p120 = por %p118, %p119
      %s121 = ssub.s32 %s19, %s26
      %p122 = scmp.eq.s32.totalorder %s121, 0
      %s124 = sadd.s32 %s123, 1
      %s125 = scalar_select %p122, %s123, %s124
      %p128 = pneg %p122
      %p129 = scmp.eq.s32.totalorder %s19, 7
      %p130 = por %p128, %p129
      %p131 = scmp.ne.s32.totalorder %s123, %s126
      %p132 = scmp.eq.s32.totalorder %s19, 0
      %p133 = por %p131, %p132
      %p134 = scmp.ne.s32.totalorder %s123, %s126
      %p135 = scmp.eq.s32.totalorder %s24, 7
      %p136 = por %p134, %p135
      %p137 = scmp.ne.s32.totalorder %s126, %s127
      %p138 = scmp.eq.s32.totalorder %s24, 0
      %p139 = por %p137, %p138
      %p140 = scmp.ne.s32.totalorder %s126, %s127
      %p141 = scmp.eq.s32.totalorder %s25, 7
      %p142 = por %p140, %p141
      %p144 = scmp.ne.s32.totalorder %s127, %s143
      %p145 = scmp.eq.s32.totalorder %s25, 0
      %p146 = por %p144, %p145
      %p147 = scmp.le.s32.totalorder 1, %s19
      %p148 = scmp.lt.s32.totalorder %s19, 9
      %p149 = pnand %p147, %p148
      %p150 = pneg %p149
      // Predicated region
      $region9: #{tpu_custom_call.1} parent=5 // pred_check
        _
      $region10: #{tpu_custom_call.1} parent=5 // pred_check_branch
        %152 = sbr.rel (%p149) target = $region12
      $region11: #{tpu_custom_call.1} parent=5 // pred_region
        %s153 = ssub.s32 %s19, 1
        // Predicated region
        $region13: #{tpu_custom_call.1} parent=11 // pred_check
          %p154 = pneg %p92
        $region14: #{tpu_custom_call.1} parent=11 // pred_check_branch
          %156 = sbr.rel (%p154) target = $region16
        $region15: #{tpu_custom_call.1} parent=11 // pred_region
          %s158 = ssub.s32 8192, 8192
          %159 = vsyncadd [#allocation6], %s158
          %s160 = sshll.u32 [#allocation7], 4
          %s161 = int_to_ptr.vmem [resolvable:$true] %s160
          %166 = dma.hbm_to_vmem [thread:$0]  %s2, 8192, %s161, [#allocation6], 128, 128, 8
        $region16: #{tpu_custom_call.1} parent=11 // pred_fallthru
          _
        // Predicated region
        $region17: #{tpu_custom_call.1} parent=11 // pred_check
          %p167 = pneg %p113
        $region18: #{tpu_custom_call.1} parent=11 // pred_check_branch
          %169 = sbr.rel (%p167) target = $region20
        $region19: #{tpu_custom_call.1} parent=11 // pred_region
          _
        $region20: #{tpu_custom_call.1} parent=11 // pred_fallthru
          _
      $region12: #{tpu_custom_call.1} parent=5 // pred_fallthru
        _
      %p170 = scmp.lt.s32.totalorder %s19, 8
      // Predicated region
      $region21: #{tpu_custom_call.1} parent=5 // pred_check
        %p171 = pneg %p170
      $region22: #{tpu_custom_call.1} parent=5 // pred_check_branch
        %173 = sbr.rel (%p171) target = $region24
      $region23: #{tpu_custom_call.1} parent=5 // pred_region
        // Predicated region
        $region25: #{tpu_custom_call.1} parent=23 // pred_check
          %p174 = pneg %p39
        $region26: #{tpu_custom_call.1} parent=23 // pred_check_branch
          %176 = sbr.rel (%p174) target = $region28
        $region27: #{tpu_custom_call.1} parent=23 // pred_region
          %s177 = sand.u32 %s29, 1
          %s178 = scalar_lea.sflag [#allocation3], %s177
          %s179 = sand.u32 %s29, 1
          %s180 = smul.addr %s179, 16
          %s181 = scalar_lea.vmem [#allocation2], %s180
          %s183 = ssub.s32 256, 256
          %184 = vsyncadd %s178, %s183
          %s185 = smul.addr %s19, 4
          %s186 = smul.addr %s185, 64
          %s187 = scalar_lea.hbm %s0, %s186
          %s188 = sshll.u32 %s181, 4
          %s189 = int_to_ptr.vmem [resolvable:$true] %s188
          %194 = dma.hbm_to_vmem [thread:$0]  %s187, 256, %s189, %s178, 64, 64, 4
        $region28: #{tpu_custom_call.1} parent=23 // pred_fallthru
          _
        // Predicated region
        $region29: #{tpu_custom_call.1} parent=23 // pred_check
          %p195 = pneg %p65
        $region30: #{tpu_custom_call.1} parent=23 // pred_check_branch
          %197 = sbr.rel (%p195) target = $region32
        $region31: #{tpu_custom_call.1} parent=23 // pred_region
          %s198 = sand.u32 %s19, 1
          %s199 = scalar_lea.sflag [#allocation6], %s198
          %s200 = sand.u32 %s55, 1
          %s201 = smul.addr %s200, 16
          %s202 = scalar_lea.vmem [#allocation5], %s201
          %s204 = ssub.s32 256, 256
          %205 = vsyncadd %s199, %s204
          %s206 = smul.addr %s19, 4
          %s207 = smul.addr %s206, 64
          %s208 = scalar_lea.hbm %s1, %s207
          %s209 = sshll.u32 %s202, 4
          %s210 = int_to_ptr.vmem [resolvable:$true] %s209
          %215 = dma.hbm_to_vmem [thread:$0]  %s208, 256, %s210, %s199, 64, 64, 4
        $region32: #{tpu_custom_call.1} parent=23 // pred_fallthru
          _
      $region24: #{tpu_custom_call.1} parent=5 // pred_fallthru
        _
      %p216 = scmp.le.s32.totalorder 1, %s19
      %p217 = scmp.lt.s32.totalorder %s19, 9
      %p218 = pnand %p216, %p217
      %p219 = pneg %p218
      // Predicated region
      $region33: #{tpu_custom_call.1} parent=5 // pred_check
        _
      $region34: #{tpu_custom_call.1} parent=5 // pred_check_branch
        %221 = sbr.rel (%p218) target = $region36
      $region35: #{tpu_custom_call.1} parent=5 // pred_region
        %s222 = ssub.s32 %s19, 1
        %s223 = sand.u32 %s32, 1
        %s224 = scalar_lea.sflag [#allocation3], %s223
        %s225 = sand.u32 %s32, 1
        %s226 = smul.addr %s225, 16
        %s227 = scalar_lea.vmem [#allocation2], %s226
        // Predicated region
        $region37: #{tpu_custom_call.1} parent=35 // pred_check
          %p228 = pneg %p45
        $region38: #{tpu_custom_call.1} parent=35 // pred_check_branch
          %230 = sbr.rel (%p228) target = $region40
        $region39: #{tpu_custom_call.1} parent=35 // pred_region
          %231 = dma.done %s224, 256
        $region40: #{tpu_custom_call.1} parent=35 // pred_fallthru
          _
        %s232 = sand.u32 %s24, 1
        %s233 = scalar_lea.sflag [#allocation6], %s232
        %s234 = sand.u32 %s58, 1
        %s235 = smul.addr %s234, 16
        %s236 = scalar_lea.vmem [#allocation5], %s235
        // Predicated region
        $region41: #{tpu_custom_call.1} parent=35 // pred_check
          %p237 = pneg %p71
        $region42: #{tpu_custom_call.1} parent=35 // pred_check_branch
          %239 = sbr.rel (%p237) target = $region44
        $region43: #{tpu_custom_call.1} parent=35 // pred_region
          %240 = dma.done %s233, 256
        $region44: #{tpu_custom_call.1} parent=35 // pred_fallthru
          _
        // Predicated region
        $region45: #{tpu_custom_call.1} parent=35 // pred_check
          %p241 = pneg %p92
        $region46: #{tpu_custom_call.1} parent=35 // pred_check_branch
          %243 = sbr.rel (%p241) target = $region48
        $region47: #{tpu_custom_call.1} parent=35 // pred_region
          %244 = dma.done [#allocation6], 8192
        $region48: #{tpu_custom_call.1} parent=35 // pred_fallthru
          _
        %s245 = sand.u32 %s32, 1
        %s246 = scalar_lea.sflag [#allocation3], %s245
        %s247 = sand.u32 %s32, 1
        %s248 = smul.addr %s247, 16
        %s249 = scalar_lea.vmem [#allocation2], %s248
        %p250 = pneg %p45
        %p251 = pneg %p42
        %s252 = sand.u32 %s24, 1
        %s253 = scalar_lea.sflag [#allocation6], %s252
        %s254 = sand.u32 %s58, 1
        %s255 = smul.addr %s254, 16
        %s256 = scalar_lea.vmem [#allocation5], %s255
        %p257 = pneg %p71
        %p258 = pneg %p68
        %p259 = pneg %p92
        %p260 = pneg %p89
        %p261 = pneg %p113
        %p262 = pneg %p110
        %p263 = pneg %p139
        %p264 = pneg %p136
        %s265 = sand.u32 %s126, 1
        %s266 = scalar_lea.sflag [#allocation4], %s265
        %s267 = sand.u32 %s126, 1
        %s268 = smul.addr %s267, 32
        %s269 = scalar_lea.vmem [#allocation8], %s268
        %v271 = vld [vmem:[%s236] sm:$0xf]
        %v272 = vld [vmem:[%s236 + $0x4] sm:$0xf]
        %v273 = vld [vmem:[%s236 + $0x8] sm:$0xf]
        %v274 = vld [vmem:[%s236 + $0xc] sm:$0xf]
        %v275 = vld [vmem:[%s227] sm:$0xf]
        %v276 = vld [vmem:[%s227 + $0x4] sm:$0xf]
        %v277 = vld [vmem:[%s227 + $0x8] sm:$0xf]
        %v278 = vld [vmem:[%s227 + $0xc] sm:$0xf]
        %v279 = vld [vmem:[%s3] sm:$0xff]
        %v280 = vld [vmem:[#allocation7] sm:$0xff]
        %v281 = vld [vmem:[#allocation7 + $0x8] sm:$0xff]
        %v282 = vld [vmem:[#allocation7 + $0x10] sm:$0xff]
        %v283 = vld [vmem:[#allocation7 + $0x18] sm:$0xff]
        %v284 = vld [vmem:[#allocation7 + $0x20] sm:$0xff]
        %v285 = vld [vmem:[#allocation7 + $0x28] sm:$0xff]
        %v286 = vld [vmem:[#allocation7 + $0x30] sm:$0xff]
        %v287 = vld [vmem:[#allocation7 + $0x38] sm:$0xff]
        %v288 = vld [vmem:[#allocation7 + $0x40] sm:$0xff]
        %v289 = vld [vmem:[#allocation7 + $0x48] sm:$0xff]
        %v290 = vld [vmem:[#allocation7 + $0x50] sm:$0xff]
        %v291 = vld [vmem:[#allocation7 + $0x58] sm:$0xff]
        %v292 = vld [vmem:[#allocation7 + $0x60] sm:$0xff]
        %v293 = vld [vmem:[#allocation7 + $0x68] sm:$0xff]
        %v294 = vld [vmem:[#allocation7 + $0x70] sm:$0xff]
        %v295 = vld [vmem:[#allocation7 + $0x78] sm:$0xff]
        %s296 = scalar_lea.vmem [#allocation7], 128
        %v297 = vld [vmem:[%s296] sm:$0xff]
        %v298 = vld [vmem:[%s296 + $0x8] sm:$0xff]
        %v299 = vld [vmem:[%s296 + $0x10] sm:$0xff]
        %v300 = vld [vmem:[%s296 + $0x18] sm:$0xff]
        %v301 = vld [vmem:[%s296 + $0x20] sm:$0xff]
        %v302 = vld [vmem:[%s296 + $0x28] sm:$0xff]
        %v303 = vld [vmem:[%s296 + $0x30] sm:$0xff]
        %v304 = vld [vmem:[%s296 + $0x38] sm:$0xff]
        %v305 = vld [vmem:[%s296 + $0x40] sm:$0xff]
        %v306 = vld [vmem:[%s296 + $0x48] sm:$0xff]
        %v307 = vld [vmem:[%s296 + $0x50] sm:$0xff]
        %v308 = vld [vmem:[%s296 + $0x58] sm:$0xff]
        %v309 = vld [vmem:[%s296 + $0x60] sm:$0xff]
        %v310 = vld [vmem:[%s296 + $0x68] sm:$0xff]
        %v311 = vld [vmem:[%s296 + $0x70] sm:$0xff]
        %v312 = vld [vmem:[%s296 + $0x78] sm:$0xff]
        %v317 = vunpack.c.l.b16 %v271
        %v318 = vunpack.c.l.b16 %v272
        %v319 = vunpack.c.l.b16 %v273
        %v320 = vunpack.c.l.b16 %v274
        %v321 = vpack.c.b16 %v318, %v317
        %v322 = vpack.c.b16 %v320, %v319
        %v327 = vunpack.c.l.b16 %v275
        %v328 = vunpack.c.l.b16 %v276
        %v329 = vunpack.c.l.b16 %v277
        %v330 = vunpack.c.l.b16 %v278
        %v331 = vpack.c.b16 %v328, %v327
        %v332 = vpack.c.b16 %v330, %v329
        %vm335 = vcmask 261120
        %v337 = vsel %vm335, %v321, 0
        %v340 = vsel %vm335, %v322, 0
        %342 = vmatprep.subr.bf16.mxu0 0
        %343 = vmatpush1.bf16.msra.mxu0 %v331
        %344 = vmatprep.subr.bf16.mxu0 0
        %345 = vmatpush1.bf16.msra.mxu0 %v332
        %346 = vmatprep.subr.bf16.mxu0 0
        %347 = vmatpush1.bf16.msra.mxu0 0
        %348 = vmatprep.subr.bf16.mxu0 0
        %349 = vmatpush1.bf16.msra.mxu0 0
        %350 = vmatprep.subr.bf16.mxu0 0
        %351 = vmatpush1.bf16.msra.mxu0 0
        %352 = vmatprep.subr.bf16.mxu0 0
        %353 = vmatpush1.bf16.msra.mxu0 0
        %354 = vmatprep.subr.bf16.mxu0 0
        %355 = vmatpush1.bf16.msra.mxu0 0
        %356 = vmatprep.subr.bf16.mxu0 0
        %357 = vmatpush1.bf16.msra.mxu0 0
        %358 = vmatprep.subr.bf16.mxu0 0
        %359 = vmatpush1.bf16.msra.mxu0 0
        %360 = vmatprep.subr.bf16.mxu0 0
        %361 = vmatpush1.bf16.msra.mxu0 0
        %362 = vmatprep.subr.bf16.mxu0 0
        %363 = vmatpush1.bf16.msra.mxu0 0
        %364 = vmatprep.subr.bf16.mxu0 0
        %365 = vmatpush1.bf16.msra.mxu0 0
        %366 = vmatprep.subr.bf16.mxu0 0
        %367 = vmatpush1.bf16.msra.mxu0 0
        %368 = vmatprep.subr.bf16.mxu0 0
        %369 = vmatpush1.bf16.msra.mxu0 0
        %370 = vmatprep.subr.bf16.mxu0 0
        %371 = vmatpush1.bf16.msra.mxu0 0
        %372 = vmatprep.subr.bf16.mxu0 0
        %373 = vmatpush1.bf16.msra.mxu0 0
        %374 = vmatprep.mubr.bf16.mxu0 0
        %375 = vmatmul.mubr.bf16.gmra.mrb[0].mxu0 %v337
        %v376 = vpop.f32.mrb[0].mxu0
        %v377 = vadd.f32 0.0, %v376
        %v378 = vpop.f32.mrb[0].mxu0
        %v379 = vpop.f32.mrb[0].mxu0
        %v380 = vadd.f32 0.0, %v379
        %v381 = vpop.f32.mrb[0].mxu0
        %382 = vmatprep.mubr.bf16.mxu0 0
        %383 = vmatmul.mubr.bf16.gmra.mrb[0].mxu0 %v340
        %v384 = vpop.f32.mrb[0].mxu0
        %v385 = vadd.f32 0.0, %v384
        %v386 = vpop.f32.mrb[0].mxu0
        %v387 = vpop.f32.mrb[0].mxu0
        %v388 = vadd.f32 0.0, %v387
        %v389 = vpop.f32.mrb[0].mxu0
        %390 = vdwg.mxu0
        %v391 = vlaneseq
        %v392 = vshrl.u32 %v391, 7
        %v393 = vsub.s32 0, %v392
        %v394 = vrot.slane %v279, %v393
        %395 = vmatprep.subr.mxu0 0.0
        %396 = vmatpush1.msra.mxu0 %v280
        %397 = vmatprep.subr.mxu0 0.0
        %398 = vmatpush1.msra.mxu0 %v281
        %399 = vmatprep.subr.mxu0 0.0
        %400 = vmatpush1.msra.mxu0 %v282
        %401 = vmatprep.subr.mxu0 0.0
        %402 = vmatpush1.msra.mxu0 %v283
        %403 = vmatprep.subr.mxu0 0.0
        %404 = vmatpush1.msra.mxu0 %v284
        %405 = vmatprep.subr.mxu0 0.0
        %406 = vmatpush1.msra.mxu0 %v285
        %407 = vmatprep.subr.mxu0 0.0
        %408 = vmatpush1.msra.mxu0 %v286
        %409 = vmatprep.subr.mxu0 0.0
        %410 = vmatpush1.msra.mxu0 %v287
        %411 = vmatprep.subr.mxu0 0.0
        %412 = vmatpush1.msra.mxu0 %v288
        %413 = vmatprep.subr.mxu0 0.0
        %414 = vmatpush1.msra.mxu0 %v289
        %415 = vmatprep.subr.mxu0 0.0
        %416 = vmatpush1.msra.mxu0 %v290
        %417 = vmatprep.subr.mxu0 0.0
        %418 = vmatpush1.msra.mxu0 %v291
        %419 = vmatprep.subr.mxu0 0.0
        %420 = vmatpush1.msra.mxu0 %v292
        %421 = vmatprep.subr.mxu0 0.0
        %422 = vmatpush1.msra.mxu0 %v293
        %423 = vmatprep.subr.mxu0 0.0
        %424 = vmatpush1.msra.mxu0 %v294
        %425 = vmatprep.subr.mxu0 0.0
        %426 = vmatpush1.msra.mxu0 %v295
        %427 = vmatprep.subr.mxu0 0.0
        %428 = vmatpush1.msra.mxu0 0.0
        %429 = vmatprep.subr.mxu0 0.0
        %430 = vmatpush1.msra.mxu0 0.0
        %431 = vmatprep.subr.mxu0 0.0
        %432 = vmatpush1.msra.mxu0 0.0
        %433 = vmatprep.subr.mxu0 0.0
        %434 = vmatpush1.msra.mxu0 0.0
        %435 = vmatprep.subr.mxu0 0.0
        %436 = vmatpush1.msra.mxu0 0.0
        %437 = vmatprep.subr.mxu0 0.0
        %438 = vmatpush1.msra.mxu0 0.0
        %439 = vmatprep.subr.mxu0 0.0
        %440 = vmatpush1.msra.mxu0 0.0
        %441 = vmatprep.subr.mxu0 0.0
        %442 = vmatpush1.msra.mxu0 0.0
        %443 = vmatprep.subr.mxu0 0.0
        %444 = vmatpush1.msra.mxu0 0.0
        %445 = vmatprep.subr.mxu0 0.0
        %446 = vmatpush1.msra.mxu0 0.0
        %447 = vmatprep.subr.mxu0 0.0
        %448 = vmatpush1.msra.mxu0 0.0
        %449 = vmatprep.subr.mxu0 0.0
        %450 = vmatpush1.msra.mxu0 0.0
        %451 = vmatprep.subr.mxu0 0.0
        %452 = vmatpush1.msra.mxu0 0.0
        %453 = vmatprep.subr.mxu0 0.0
        %454 = vmatpush1.msra.mxu0 0.0
        %455 = vmatprep.subr.mxu0 0.0
        %456 = vmatpush1.msra.mxu0 0.0
        %457 = vmatprep.subr.mxu0 0.0
        %458 = vmatpush1.msra.mxu0 0.0
        %459 = vmatprep.mubr.f32.mxu0 0.0
        %460 = vmatmul.mubr.f32.gmra.mrb[0].mxu0 %v377
        %v461 = vpop.f32.mrb[0].mxu0
        %v462 = vadd.f32 %v394, %v461
        %v463 = vpop.f32.mrb[0].mxu0
        %464 = vmatprep.mubr.f32.mxu0 0.0
        %465 = vmatmul.mubr.f32.gmra.mrb[0].mxu0 %v380
        %v466 = vpop.f32.mrb[0].mxu0
        %v467 = vadd.f32 %v394, %v466
        %v468 = vpop.f32.mrb[0].mxu0
        %469 = vmatprep.mubr.f32.mxu0 0.0
        %470 = vmatmul.mubr.f32.gmra.mrb[0].mxu0 %v385
        %v471 = vpop.f32.mrb[0].mxu0
        %v472 = vadd.f32 %v394, %v471
        %v473 = vpop.f32.mrb[0].mxu0
        %474 = vmatprep.mubr.f32.mxu0 0.0
        %475 = vmatmul.mubr.f32.gmra.mrb[0].mxu0 %v388
        %v476 = vpop.f32.mrb[0].mxu0
        %v477 = vadd.f32 %v394, %v476
        %v478 = vpop.f32.mrb[0].mxu0
        %479 = vdwg.mxu0
        %v480 = vadd.f32 %v462, %v467
        %v481 = vadd.f32 %v480, %v472
        %v482 = vadd.f32 %v481, %v477
        %v483 = vrot.slane %v482, 4
        %v484 = vadd.f32 %v482, %v483
        %v485 = vrot.slane %v484, 2
        %v486 = vadd.f32 %v484, %v485
        %v487 = vrot.slane %v486, 1
        %v488 = vadd.f32 %v486, %v487
        %v489 = vrcp.pop 32.0
        %v490 = vmul.f32 %v488, %v489
        %v491 = vmul.f32 %v462, %v462
        %v492 = vmul.f32 %v467, %v467
        %v493 = vmul.f32 %v472, %v472
        %v494 = vmul.f32 %v477, %v477
        %v495 = vadd.f32 %v491, %v492
        %v496 = vadd.f32 %v495, %v493
        %v497 = vadd.f32 %v496, %v494
        %v498 = vrot.slane %v497, 4
        %v499 = vadd.f32 %v497, %v498
        %v500 = vrot.slane %v499, 2
        %v501 = vadd.f32 %v499, %v500
        %v502 = vrot.slane %v501, 1
        %v503 = vadd.f32 %v501, %v502
        %v504 = vmul.f32 %v503, %v489
        %v505 = vmul.f32 %v490, %v490
        %v506 = vsub.f32 %v504, %v505
        %v507 = vadd.f32 %v506, 1e-05
        %v508 = vrsqrt.pop %v507
        %v509 = vmul.f32 %v279, %v508
        %v510 = vmul.f32 %v490, %v509
        %v512 = vrot.slane %v510, 7
        %v514 = vsub.f32 %v279, %v512
        %v515 = vlaneseq
        %v516 = vshrl.u32 %v515, 7
        %v517 = vsub.s32 1, %v516
        %v518 = vrot.slane %v509, %v517
        %v519 = vmul.f32 %v462, %v518
        %v520 = vmul.f32 %v467, %v518
        %v521 = vmul.f32 %v472, %v518
        %v522 = vmul.f32 %v477, %v518
        %v523 = vlaneseq
        %v524 = vshrl.u32 %v523, 7
        %v525 = vsub.s32 2, %v524
        %v526 = vrot.slane %v514, %v525
        %v527 = vadd.f32 %v519, %v526
        %v528 = vadd.f32 %v520, %v526
        %v529 = vadd.f32 %v521, %v526
        %v530 = vadd.f32 %v522, %v526
        %v531 = vmax.f32 %v527, 0.0
        %v532 = vmax.f32 %v528, 0.0
        %v533 = vmax.f32 %v529, 0.0
        %v534 = vmax.f32 %v530, 0.0
        %v535 = vlaneseq
        %v536 = vshrl.u32 %v535, 7
        %v537 = vsub.s32 3, %v536
        %v538 = vrot.slane %v279, %v537
        %539 = vmatprep.subr.mxu0 0.0
        %540 = vmatpush1.msra.mxu0 %v297
        %541 = vmatprep.subr.mxu0 0.0
        %542 = vmatpush1.msra.mxu0 %v298
        %543 = vmatprep.subr.mxu0 0.0
        %544 = vmatpush1.msra.mxu0 %v299
        %545 = vmatprep.subr.mxu0 0.0
        %546 = vmatpush1.msra.mxu0 %v300
        %547 = vmatprep.subr.mxu0 0.0
        %548 = vmatpush1.msra.mxu0 %v301
        %549 = vmatprep.subr.mxu0 0.0
        %550 = vmatpush1.msra.mxu0 %v302
        %551 = vmatprep.subr.mxu0 0.0
        %552 = vmatpush1.msra.mxu0 %v303
        %553 = vmatprep.subr.mxu0 0.0
        %554 = vmatpush1.msra.mxu0 %v304
        %555 = vmatprep.subr.mxu0 0.0
        %556 = vmatpush1.msra.mxu0 %v305
        %557 = vmatprep.subr.mxu0 0.0
        %558 = vmatpush1.msra.mxu0 %v306
        %559 = vmatprep.subr.mxu0 0.0
        %560 = vmatpush1.msra.mxu0 %v307
        %561 = vmatprep.subr.mxu0 0.0
        %562 = vmatpush1.msra.mxu0 %v308
        %563 = vmatprep.subr.mxu0 0.0
        %564 = vmatpush1.msra.mxu0 %v309
        %565 = vmatprep.subr.mxu0 0.0
        %566 = vmatpush1.msra.mxu0 %v310
        %567 = vmatprep.subr.mxu0 0.0
        %568 = vmatpush1.msra.mxu0 %v311
        %569 = vmatprep.subr.mxu0 0.0
        %570 = vmatpush1.msra.mxu0 %v312
        %571 = vmatprep.subr.mxu0 0.0
        %572 = vmatpush1.msra.mxu0 0.0
        %573 = vmatprep.subr.mxu0 0.0
        %574 = vmatpush1.msra.mxu0 0.0
        %575 = vmatprep.subr.mxu0 0.0
        %576 = vmatpush1.msra.mxu0 0.0
        %577 = vmatprep.subr.mxu0 0.0
        %578 = vmatpush1.msra.mxu0 0.0
        %579 = vmatprep.subr.mxu0 0.0
        %580 = vmatpush1.msra.mxu0 0.0
        %581 = vmatprep.subr.mxu0 0.0
        %582 = vmatpush1.msra.mxu0 0.0
        %583 = vmatprep.subr.mxu0 0.0
        %584 = vmatpush1.msra.mxu0 0.0
        %585 = vmatprep.subr.mxu0 0.0
        %586 = vmatpush1.msra.mxu0 0.0
        %587 = vmatprep.subr.mxu0 0.0
        %588 = vmatpush1.msra.mxu0 0.0
        %589 = vmatprep.subr.mxu0 0.0
        %590 = vmatpush1.msra.mxu0 0.0
        %591 = vmatprep.subr.mxu0 0.0
        %592 = vmatpush1.msra.mxu0 0.0
        %593 = vmatprep.subr.mxu0 0.0
        %594 = vmatpush1.msra.mxu0 0.0
        %595 = vmatprep.subr.mxu0 0.0
        %596 = vmatpush1.msra.mxu0 0.0
        %597 = vmatprep.subr.mxu0 0.0
        %598 = vmatpush1.msra.mxu0 0.0
        %599 = vmatprep.subr.mxu0 0.0
        %600 = vmatpush1.msra.mxu0 0.0
        %601 = vmatprep.subr.mxu0 0.0
        %602 = vmatpush1.msra.mxu0 0.0
        %603 = vmatprep.mubr.f32.mxu0 0.0
        %604 = vmatmul.mubr.f32.gmra.mrb[0].mxu0 %v531
        %v605 = vpop.f32.mrb[0].mxu0
        %v606 = vadd.f32 %v538, %v605
        %v607 = vpop.f32.mrb[0].mxu0
        %608 = vmatprep.mubr.f32.mxu0 0.0
        %609 = vmatmul.mubr.f32.gmra.mrb[0].mxu0 %v532
        %v610 = vpop.f32.mrb[0].mxu0
        %v611 = vadd.f32 %v538, %v610
        %v612 = vpop.f32.mrb[0].mxu0
        %613 = vmatprep.mubr.f32.mxu0 0.0
        %614 = vmatmul.mubr.f32.gmra.mrb[0].mxu0 %v533
        %v615 = vpop.f32.mrb[0].mxu0
        %v616 = vadd.f32 %v538, %v615
        %v617 = vpop.f32.mrb[0].mxu0
        %618 = vmatprep.mubr.f32.mxu0 0.0
        %619 = vmatmul.mubr.f32.gmra.mrb[0].mxu0 %v534
        %v620 = vpop.f32.mrb[0].mxu0
        %v621 = vadd.f32 %v538, %v620
        %v622 = vpop.f32.mrb[0].mxu0
        %623 = vdwg.mxu0
        %v624 = vmax.f32 %v606, 0.0
        %v625 = vmax.f32 %v611, 0.0
        %v626 = vmax.f32 %v616, 0.0
        %v627 = vmax.f32 %v621, 0.0
        %v628 = vpack.c.bf16 %v625, %v624
        %v629 = vpack.c.bf16 %v627, %v626
        %s630 = scalar_lea.vmem [#allocation7], 256
        %v631 = vld [vmem:[%s630] sm:$0xff]
        %v632 = vld [vmem:[%s630 + $0x8] sm:$0xff]
        %v633 = vld [vmem:[%s630 + $0x10] sm:$0xff]
        %v634 = vld [vmem:[%s630 + $0x18] sm:$0xff]
        %v635 = vld [vmem:[%s630 + $0x20] sm:$0xff]
        %v636 = vld [vmem:[%s630 + $0x28] sm:$0xff]
        %v637 = vld [vmem:[%s630 + $0x30] sm:$0xff]
        %v638 = vld [vmem:[%s630 + $0x38] sm:$0xff]
        %v639 = vld [vmem:[%s630 + $0x40] sm:$0xff]
        %v640 = vld [vmem:[%s630 + $0x48] sm:$0xff]
        %v641 = vld [vmem:[%s630 + $0x50] sm:$0xff]
        %v642 = vld [vmem:[%s630 + $0x58] sm:$0xff]
        %v643 = vld [vmem:[%s630 + $0x60] sm:$0xff]
        %v644 = vld [vmem:[%s630 + $0x68] sm:$0xff]
        %v645 = vld [vmem:[%s630 + $0x70] sm:$0xff]
        %v646 = vld [vmem:[%s630 + $0x78] sm:$0xff]
        %s647 = scalar_lea.vmem [#allocation7], 384
        %v648 = vld [vmem:[%s647] sm:$0xff]
        %v649 = vld [vmem:[%s647 + $0x8] sm:$0xff]
        %v650 = vld [vmem:[%s647 + $0x10] sm:$0xff]
        %v651 = vld [vmem:[%s647 + $0x18] sm:$0xff]
        %v652 = vld [vmem:[%s647 + $0x20] sm:$0xff]
        %v653 = vld [vmem:[%s647 + $0x28] sm:$0xff]
        %v654 = vld [vmem:[%s647 + $0x30] sm:$0xff]
        %v655 = vld [vmem:[%s647 + $0x38] sm:$0xff]
        %v656 = vld [vmem:[%s647 + $0x40] sm:$0xff]
        %v657 = vld [vmem:[%s647 + $0x48] sm:$0xff]
        %v658 = vld [vmem:[%s647 + $0x50] sm:$0xff]
        %v659 = vld [vmem:[%s647 + $0x58] sm:$0xff]
        %v660 = vld [vmem:[%s647 + $0x60] sm:$0xff]
        %v661 = vld [vmem:[%s647 + $0x68] sm:$0xff]
        %v662 = vld [vmem:[%s647 + $0x70] sm:$0xff]
        %v663 = vld [vmem:[%s647 + $0x78] sm:$0xff]
        %664 = vmatprep.subr.bf16.mxu0 0
        %665 = vmatpush1.bf16.msra.mxu0 %v628
        %666 = vmatprep.subr.bf16.mxu0 0
        %667 = vmatpush1.bf16.msra.mxu0 %v629
        %668 = vmatprep.subr.bf16.mxu0 0
        %669 = vmatpush1.bf16.msra.mxu0 0
        %670 = vmatprep.subr.bf16.mxu0 0
        %671 = vmatpush1.bf16.msra.mxu0 0
        %672 = vmatprep.subr.bf16.mxu0 0
        %673 = vmatpush1.bf16.msra.mxu0 0
        %674 = vmatprep.subr.bf16.mxu0 0
        %675 = vmatpush1.bf16.msra.mxu0 0
        %676 = vmatprep.subr.bf16.mxu0 0
        %677 = vmatpush1.bf16.msra.mxu0 0
        %678 = vmatprep.subr.bf16.mxu0 0
        %679 = vmatpush1.bf16.msra.mxu0 0
        %680 = vmatprep.subr.bf16.mxu0 0
        %681 = vmatpush1.bf16.msra.mxu0 0
        %682 = vmatprep.subr.bf16.mxu0 0
        %683 = vmatpush1.bf16.msra.mxu0 0
        %684 = vmatprep.subr.bf16.mxu0 0
        %685 = vmatpush1.bf16.msra.mxu0 0
        %686 = vmatprep.subr.bf16.mxu0 0
        %687 = vmatpush1.bf16.msra.mxu0 0
        %688 = vmatprep.subr.bf16.mxu0 0
        %689 = vmatpush1.bf16.msra.mxu0 0
        %690 = vmatprep.subr.bf16.mxu0 0
        %691 = vmatpush1.bf16.msra.mxu0 0
        %692 = vmatprep.subr.bf16.mxu0 0
        %693 = vmatpush1.bf16.msra.mxu0 0
        %694 = vmatprep.subr.bf16.mxu0 0
        %695 = vmatpush1.bf16.msra.mxu0 0
        %696 = vmatprep.mubr.bf16.mxu0 0
        %697 = vmatmul.mubr.bf16.gmra.mrb[0].mxu0 %v337
        %v698 = vpop.f32.mrb[0].mxu0
        %v699 = vadd.f32 0.0, %v698
        %v700 = vpop.f32.mrb[0].mxu0
        %v701 = vpop.f32.mrb[0].mxu0
        %v702 = vadd.f32 0.0, %v701
        %v703 = vpop.f32.mrb[0].mxu0
        %704 = vmatprep.mubr.bf16.mxu0 0
        %705 = vmatmul.mubr.bf16.gmra.mrb[0].mxu0 %v340
        %v706 = vpop.f32.mrb[0].mxu0
        %v707 = vadd.f32 0.0, %v706
        %v708 = vpop.f32.mrb[0].mxu0
        %v709 = vpop.f32.mrb[0].mxu0
        %v710 = vadd.f32 0.0, %v709
        %v711 = vpop.f32.mrb[0].mxu0
        %712 = vdwg.mxu0
        %v713 = vlaneseq
        %v714 = vshrl.u32 %v713, 7
        %v715 = vsub.s32 4, %v714
        %v716 = vrot.slane %v279, %v715
        %717 = vmatprep.subr.mxu0 0.0
        %718 = vmatpush1.msra.mxu0 %v631
        %719 = vmatprep.subr.mxu0 0.0
        %720 = vmatpush1.msra.mxu0 %v632
        %721 = vmatprep.subr.mxu0 0.0
        %722 = vmatpush1.msra.mxu0 %v633
        %723 = vmatprep.subr.mxu0 0.0
        %724 = vmatpush1.msra.mxu0 %v634
        %725 = vmatprep.subr.mxu0 0.0
        %726 = vmatpush1.msra.mxu0 %v635
        %727 = vmatprep.subr.mxu0 0.0
        %728 = vmatpush1.msra.mxu0 %v636
        %729 = vmatprep.subr.mxu0 0.0
        %730 = vmatpush1.msra.mxu0 %v637
        %731 = vmatprep.subr.mxu0 0.0
        %732 = vmatpush1.msra.mxu0 %v638
        %733 = vmatprep.subr.mxu0 0.0
        %734 = vmatpush1.msra.mxu0 %v639
        %735 = vmatprep.subr.mxu0 0.0
        %736 = vmatpush1.msra.mxu0 %v640
        %737 = vmatprep.subr.mxu0 0.0
        %738 = vmatpush1.msra.mxu0 %v641
        %739 = vmatprep.subr.mxu0 0.0
        %740 = vmatpush1.msra.mxu0 %v642
        %741 = vmatprep.subr.mxu0 0.0
        %742 = vmatpush1.msra.mxu0 %v643
        %743 = vmatprep.subr.mxu0 0.0
        %744 = vmatpush1.msra.mxu0 %v644
        %745 = vmatprep.subr.mxu0 0.0
        %746 = vmatpush1.msra.mxu0 %v645
        %747 = vmatprep.subr.mxu0 0.0
        %748 = vmatpush1.msra.mxu0 %v646
        %749 = vmatprep.subr.mxu0 0.0
        %750 = vmatpush1.msra.mxu0 0.0
        %751 = vmatprep.subr.mxu0 0.0
        %752 = vmatpush1.msra.mxu0 0.0
        %753 = vmatprep.subr.mxu0 0.0
        %754 = vmatpush1.msra.mxu0 0.0
        %755 = vmatprep.subr.mxu0 0.0
        %756 = vmatpush1.msra.mxu0 0.0
        %757 = vmatprep.subr.mxu0 0.0
        %758 = vmatpush1.msra.mxu0 0.0
        %759 = vmatprep.subr.mxu0 0.0
        %760 = vmatpush1.msra.mxu0 0.0
        %761 = vmatprep.subr.mxu0 0.0
        %762 = vmatpush1.msra.mxu0 0.0
        %763 = vmatprep.subr.mxu0 0.0
        %764 = vmatpush1.msra.mxu0 0.0
        %765 = vmatprep.subr.mxu0 0.0
        %766 = vmatpush1.msra.mxu0 0.0
        %767 = vmatprep.subr.mxu0 0.0
        %768 = vmatpush1.msra.mxu0 0.0
        %769 = vmatprep.subr.mxu0 0.0
        %770 = vmatpush1.msra.mxu0 0.0
        %771 = vmatprep.subr.mxu0 0.0
        %772 = vmatpush1.msra.mxu0 0.0
        %773 = vmatprep.subr.mxu0 0.0
        %774 = vmatpush1.msra.mxu0 0.0
        %775 = vmatprep.subr.mxu0 0.0
        %776 = vmatpush1.msra.mxu0 0.0
        %777 = vmatprep.subr.mxu0 0.0
        %778 = vmatpush1.msra.mxu0 0.0
        %779 = vmatprep.subr.mxu0 0.0
        %780 = vmatpush1.msra.mxu0 0.0
        %781 = vmatprep.mubr.f32.mxu0 0.0
        %782 = vmatmul.mubr.f32.gmra.mrb[0].mxu0 %v699
        %v783 = vpop.f32.mrb[0].mxu0
        %v784 = vadd.f32 %v716, %v783
        %v785 = vpop.f32.mrb[0].mxu0
        %786 = vmatprep.mubr.f32.mxu0 0.0
        %787 = vmatmul.mubr.f32.gmra.mrb[0].mxu0 %v702
        %v788 = vpop.f32.mrb[0].mxu0
        %v789 = vadd.f32 %v716, %v788
        %v790 = vpop.f32.mrb[0].mxu0
        %791 = vmatprep.mubr.f32.mxu0 0.0
        %792 = vmatmul.mubr.f32.gmra.mrb[0].mxu0 %v707
        %v793 = vpop.f32.mrb[0].mxu0
        %v794 = vadd.f32 %v716, %v793
        %v795 = vpop.f32.mrb[0].mxu0
        %796 = vmatprep.mubr.f32.mxu0 0.0
        %797 = vmatmul.mubr.f32.gmra.mrb[0].mxu0 %v710
        %v798 = vpop.f32.mrb[0].mxu0
        %v799 = vadd.f32 %v716, %v798
        %v800 = vpop.f32.mrb[0].mxu0
        %801 = vdwg.mxu0
        %v802 = vadd.f32 %v784, %v789
        %v803 = vadd.f32 %v802, %v794
        %v804 = vadd.f32 %v803, %v799
        %v805 = vrot.slane %v804, 4
        %v806 = vadd.f32 %v804, %v805
        %v807 = vrot.slane %v806, 2
        %v808 = vadd.f32 %v806, %v807
        %v809 = vrot.slane %v808, 1
        %v810 = vadd.f32 %v808, %v809
        %v811 = vmul.f32 %v810, %v489
        %v812 = vmul.f32 %v784, %v784
        %v813 = vmul.f32 %v789, %v789
        %v814 = vmul.f32 %v794, %v794
        %v815 = vmul.f32 %v799, %v799
        %v816 = vadd.f32 %v812, %v813
        %v817 = vadd.f32 %v816, %v814
        %v818 = vadd.f32 %v817, %v815
        %v819 = vrot.slane %v818, 4
        %v820 = vadd.f32 %v818, %v819
        %v821 = vrot.slane %v820, 2
        %v822 = vadd.f32 %v820, %v821
        %v823 = vrot.slane %v822, 1
        %v824 = vadd.f32 %v822, %v823
        %v825 = vmul.f32 %v824, %v489
        %v826 = vmul.f32 %v811, %v811
        %v827 = vsub.f32 %v825, %v826
        %v828 = vadd.f32 %v827, 1e-05
        %v829 = vrsqrt.pop %v828
        %v830 = vmul.f32 %v279, %v829
        %v831 = vmul.f32 %v811, %v830
        %v833 = vrot.slane %v831, 7
        %v835 = vsub.f32 %v279, %v833
        %v836 = vlaneseq
        %v837 = vshrl.u32 %v836, 7
        %v838 = vsub.s32 5, %v837
        %v839 = vrot.slane %v830, %v838
        %v840 = vmul.f32 %v784, %v839
        %v841 = vmul.f32 %v789, %v839
        %v842 = vmul.f32 %v794, %v839
        %v843 = vmul.f32 %v799, %v839
        %v844 = vlaneseq
        %v845 = vshrl.u32 %v844, 7
        %v846 = vsub.s32 6, %v845
        %v847 = vrot.slane %v835, %v846
        %v848 = vadd.f32 %v840, %v847
        %v849 = vadd.f32 %v841, %v847
        %v850 = vadd.f32 %v842, %v847
        %v851 = vadd.f32 %v843, %v847
        %v852 = vmax.f32 %v848, 0.0
        %v853 = vmax.f32 %v849, 0.0
        %v854 = vmax.f32 %v850, 0.0
        %v855 = vmax.f32 %v851, 0.0
        %v856 = vlaneseq
        %v857 = vshrl.u32 %v856, 7
        %v858 = vsub.s32 7, %v857
        %v859 = vrot.slane %v279, %v858
        %860 = vmatprep.subr.mxu0 0.0
        %861 = vmatpush1.msra.mxu0 %v648
        %862 = vmatprep.subr.mxu0 0.0
        %863 = vmatpush1.msra.mxu0 %v649
        %864 = vmatprep.subr.mxu0 0.0
        %865 = vmatpush1.msra.mxu0 %v650
        %866 = vmatprep.subr.mxu0 0.0
        %867 = vmatpush1.msra.mxu0 %v651
        %868 = vmatprep.subr.mxu0 0.0
        %869 = vmatpush1.msra.mxu0 %v652
        %870 = vmatprep.subr.mxu0 0.0
        %871 = vmatpush1.msra.mxu0 %v653
        %872 = vmatprep.subr.mxu0 0.0
        %873 = vmatpush1.msra.mxu0 %v654
        %874 = vmatprep.subr.mxu0 0.0
        %875 = vmatpush1.msra.mxu0 %v655
        %876 = vmatprep.subr.mxu0 0.0
        %877 = vmatpush1.msra.mxu0 %v656
        %878 = vmatprep.subr.mxu0 0.0
        %879 = vmatpush1.msra.mxu0 %v657
        %880 = vmatprep.subr.mxu0 0.0
        %881 = vmatpush1.msra.mxu0 %v658
        %882 = vmatprep.subr.mxu0 0.0
        %883 = vmatpush1.msra.mxu0 %v659
        %884 = vmatprep.subr.mxu0 0.0
        %885 = vmatpush1.msra.mxu0 %v660
        %886 = vmatprep.subr.mxu0 0.0
        %887 = vmatpush1.msra.mxu0 %v661
        %888 = vmatprep.subr.mxu0 0.0
        %889 = vmatpush1.msra.mxu0 %v662
        %890 = vmatprep.subr.mxu0 0.0
        %891 = vmatpush1.msra.mxu0 %v663
        %892 = vmatprep.subr.mxu0 0.0
        %893 = vmatpush1.msra.mxu0 0.0
        %894 = vmatprep.subr.mxu0 0.0
        %895 = vmatpush1.msra.mxu0 0.0
        %896 = vmatprep.subr.mxu0 0.0
        %897 = vmatpush1.msra.mxu0 0.0
        %898 = vmatprep.subr.mxu0 0.0
        %899 = vmatpush1.msra.mxu0 0.0
        %900 = vmatprep.subr.mxu0 0.0
        %901 = vmatpush1.msra.mxu0 0.0
        %902 = vmatprep.subr.mxu0 0.0
        %903 = vmatpush1.msra.mxu0 0.0
        %904 = vmatprep.subr.mxu0 0.0
        %905 = vmatpush1.msra.mxu0 0.0
        %906 = vmatprep.subr.mxu0 0.0
        %907 = vmatpush1.msra.mxu0 0.0
        %908 = vmatprep.subr.mxu0 0.0
        %909 = vmatpush1.msra.mxu0 0.0
        %910 = vmatprep.subr.mxu0 0.0
        %911 = vmatpush1.msra.mxu0 0.0
        %912 = vmatprep.subr.mxu0 0.0
        %913 = vmatpush1.msra.mxu0 0.0
        %914 = vmatprep.subr.mxu0 0.0
        %915 = vmatpush1.msra.mxu0 0.0
        %916 = vmatprep.subr.mxu0 0.0
        %917 = vmatpush1.msra.mxu0 0.0
        %918 = vmatprep.subr.mxu0 0.0
        %919 = vmatpush1.msra.mxu0 0.0
        %920 = vmatprep.subr.mxu0 0.0
        %921 = vmatpush1.msra.mxu0 0.0
        %922 = vmatprep.subr.mxu0 0.0
        %923 = vmatpush1.msra.mxu0 0.0
        %924 = vmatprep.mubr.f32.mxu0 0.0
        %925 = vmatmul.mubr.f32.gmra.mrb[0].mxu0 %v852
        %v926 = vpop.f32.mrb[0].mxu0
        %v927 = vadd.f32 %v859, %v926
        %v928 = vpop.f32.mrb[0].mxu0
        %929 = vmatprep.mubr.f32.mxu0 0.0
        %930 = vmatmul.mubr.f32.gmra.mrb[0].mxu0 %v853
        %v931 = vpop.f32.mrb[0].mxu0
        %v932 = vadd.f32 %v859, %v931
        %v933 = vpop.f32.mrb[0].mxu0
        %934 = vmatprep.mubr.f32.mxu0 0.0
        %935 = vmatmul.mubr.f32.gmra.mrb[0].mxu0 %v854
        %v936 = vpop.f32.mrb[0].mxu0
        %v937 = vadd.f32 %v859, %v936
        %v938 = vpop.f32.mrb[0].mxu0
        %939 = vmatprep.mubr.f32.mxu0 0.0
        %940 = vmatmul.mubr.f32.gmra.mrb[0].mxu0 %v855
        %v941 = vpop.f32.mrb[0].mxu0
        %v942 = vadd.f32 %v859, %v941
        %v943 = vpop.f32.mrb[0].mxu0
        %944 = vdwg.mxu0
        %v945 = vlaneseq
        %v946 = vand.u32 %v945, 127
        %vm947 = vcmp.lt.s32.totalorder %v946, 8
        %v948 = vsel %vm947, %v927, -1e+30
        %v949 = vsel %vm947, %v932, -1e+30
        %v950 = vsel %vm947, %v937, -1e+30
        %v951 = vsel %vm947, %v942, -1e+30
        %952 = vmax.xlane.f32.xlu0 %v948
        %v953 = vpop.xlane.xlu0 %952
        %954 = vmax.xlane.f32.xlu0 %v949
        %v955 = vpop.xlane.xlu0 %954
        %956 = vmax.xlane.f32.xlu0 %v950
        %v957 = vpop.xlane.xlu0 %956
        %958 = vmax.xlane.f32.xlu0 %v951
        %v959 = vpop.xlane.xlu0 %958
        %v960 = vsub.f32 %v948, %v953
        %v961 = vsub.f32 %v949, %v955
        %v962 = vsub.f32 %v950, %v957
        %v963 = vsub.f32 %v951, %v959
        %v964 = vmul.f32 %v960, 1.442695
        %v965 = vpow.pop %v964
        %v966 = vmul.f32 %v961, 1.442695
        %v967 = vpow.pop %v966
        %v968 = vmul.f32 %v962, 1.442695
        %v969 = vpow.pop %v968
        %v970 = vmul.f32 %v963, 1.442695
        %v971 = vpow.pop %v970
        %v972 = vsel %vm947, %v965, 0.0
        %v973 = vsel %vm947, %v967, 0.0
        %v974 = vsel %vm947, %v969, 0.0
        %v975 = vsel %vm947, %v971, 0.0
        %976 = vadd.xlane.f32.xlu0 %v972
        %v977 = vpop.xlane.xlu0 %976
        %978 = vadd.xlane.f32.xlu0 %v973
        %v979 = vpop.xlane.xlu0 %978
        %980 = vadd.xlane.f32.xlu0 %v974
        %v981 = vpop.xlane.xlu0 %980
        %982 = vadd.xlane.f32.xlu0 %v975
        %v983 = vpop.xlane.xlu0 %982
        %v984 = vlog2.pop %v977
        %v985 = vmul.f32 %v984, 0.6931472
        %v986 = vlog2.pop %v979
        %v987 = vmul.f32 %v986, 0.6931472
        %v988 = vlog2.pop %v981
        %v989 = vmul.f32 %v988, 0.6931472
        %v990 = vlog2.pop %v983
        %v991 = vmul.f32 %v990, 0.6931472
        %v992 = vadd.f32 %v953, %v985
        %v993 = vadd.f32 %v955, %v987
        %v994 = vadd.f32 %v957, %v989
        %v995 = vadd.f32 %v959, %v991
        %v996 = vsub.f32 %v927, %v992
        %v997 = vsub.f32 %v932, %v993
        %v998 = vsub.f32 %v937, %v994
        %v999 = vsub.f32 %v942, %v995
        %1000 = vst [vmem:[%s269] sm:$0xff] %v996
        %1001 = vst [vmem:[%s269 + $0x8] sm:$0xff] %v997
        %1002 = vst [vmem:[%s269 + $0x10] sm:$0xff] %v998
        %1003 = vst [vmem:[%s269 + $0x18] sm:$0xff] %v999
        %s1004 = sand.u32 %s126, 1
        %s1005 = scalar_lea.sflag [#allocation4], %s1004
        %s1006 = sand.u32 %s126, 1
        %s1007 = smul.addr %s1006, 32
        %s1008 = scalar_lea.vmem [#allocation8], %s1007
        // Predicated region
        $region49: #{tpu_custom_call.1} parent=35 // pred_check
          %p1009 = pneg %p136
        $region50: #{tpu_custom_call.1} parent=35 // pred_check_branch
          %1011 = sbr.rel (%p1009) target = $region52
        $region51: #{tpu_custom_call.1} parent=35 // pred_region
          %s1013 = ssub.s32 512, 512
          %1014 = vsyncadd %s1005, %s1013
          %s1015 = smul.addr %s24, 4
          %s1016 = smul.addr %s1015, 128
          %s1017 = scalar_lea.hbm %s4, %s1016
          %s1018 = sshll.u32 %s1008, 4
          %s1019 = int_to_ptr.vmem [resolvable:$true] %s1018
          %1024 = dma.vmem_to_hbm [thread:$0]  %s1019, 512, %s1017, %s1005, 128, 128, 8
        $region52: #{tpu_custom_call.1} parent=35 // pred_fallthru
          _
      $region36: #{tpu_custom_call.1} parent=5 // pred_fallthru
        _
      %p1025 = scmp.le.s32.totalorder 2, %s19
      // Predicated region
      $region53: #{tpu_custom_call.1} parent=5 // pred_check
        %p1026 = pneg %p1025
      $region54: #{tpu_custom_call.1} parent=5 // pred_check_branch
        %1028 = sbr.rel (%p1026) target = $region56
      $region55: #{tpu_custom_call.1} parent=5 // pred_region
        %s1029 = ssub.s32 %s19, 2
        // Predicated region
        $region57: #{tpu_custom_call.1} parent=55 // pred_check
          %p1030 = pneg %p142
        $region58: #{tpu_custom_call.1} parent=55 // pred_check_branch
          %1032 = sbr.rel (%p1030) target = $region60
        $region59: #{tpu_custom_call.1} parent=55 // pred_region
          %s1033 = sand.u32 %s127, 1
          %s1034 = scalar_lea.sflag [#allocation4], %s1033
          %s1035 = sand.u32 %s127, 1
          %s1036 = smul.addr %s1035, 32
          %s1037 = scalar_lea.vmem [#allocation8], %s1036
          %1038 = dma.done %s1034, 512
        $region60: #{tpu_custom_call.1} parent=55 // pred_fallthru
          _
      $region56: #{tpu_custom_call.1} parent=5 // pred_fallthru
        _
    $region6: #{tpu_custom_call.1} parent=1 // loop_footer
      %s23 = sadd.s32 1, %s19
    $region7: #{tpu_custom_call.1} parent=1 // loop_footer_branch
      %18 = sbr.rel target = $region3
    $region8: #{tpu_custom_call.1} parent=1 // loop_exit
      _
    %1039 = vsyncpa [#allocation3], 1
    %s1040 = scalar_lea.sflag [#allocation3], 1
    %1041 = vsyncpa %s1040, 1
    %1042 = vsyncpa [#allocation6], 1
    %s1043 = scalar_lea.sflag [#allocation6], 1
    %1044 = vsyncpa %s1043, 1
    %1045 = vsyncpa [#allocation4], 1
    %s1046 = scalar_lea.sflag [#allocation4], 1
    %1047 = vsyncpa %s1046, 1

</llo_original>
